<compile_context>
chip_gen: v5e
topology: v5e:2x2
jax: 0.10.0
libtpu: 0.0.40
codegen_flags: <defaults>
</compile_context>

<pallas_src>
import jax
import jax.numpy as jnp
from jax.experimental import pallas as pl
from jax.experimental.pallas import tpu as pltpu

_LANE = 128


def _zero_kernel(x_ref, o_ref):
    # out = x * 0.0 — matches torch .mul(0.0), including NaN/Inf propagation.
    # NOTE: do NOT replace with jnp.zeros_like (would halve HBM traffic but
    # change NaN semantics vs. the PyTorch reference).
    o_ref[...] = x_ref[...] * jnp.zeros((), dtype=x_ref.dtype)


def _choose_tile_cols(rows: int, n_cols: int, itemsize: int) -> int:
    """Pick a lane-dense column tile (multiple of 128).

    Targets ~2 MiB per input block buffer (double-buffered input + output stays
    well under the 16 MiB scoped-VMEM default on v5e and 32 MiB on v6e/v7x and
    64 MiB physical on v7x), preferring >= ~8 grid steps on large inputs so the
    DMA pipeline has blocks to overlap and v7x's two TCs both get work, while
    never going below 512 lanes per block (per-grid-step overhead ~0.35us).
    """
    padded = -(-n_cols // _LANE) * _LANE
    # VMEM budget: <= ~2 MiB per block buffer.
    max_cols = max(
        _LANE, (2 * 1024 * 1024 // max(rows * itemsize, 1)) // _LANE * _LANE
    )
    # Enough columns per block to reach ~8 steps on this input.
    cols_for_8_steps = -(-padded // (8 * _LANE)) * _LANE
    min_cols = min(padded, 4 * _LANE)  # >= 512 lanes (or the whole row if smaller)
    return min(max(min_cols, cols_for_8_steps), max_cols, padded)


def zero_forward(x: jax.Array, ch_num: int) -> jax.Array:
    """Pallas equivalent of Zero(ch_num).forward(x) for NCHW input x."""
    b, c, h, w = x.shape
    assert ch_num <= c, (
        "input feature map channel nums should larger than channel num variable"
    )
    if ch_num == 0:
        # Degenerate channel slice: nothing to read.
        return jnp.zeros((b, 0, h, w), dtype=x.dtype)

    full_cols = c * h * w        # contiguous per-batch row length in NCHW
    keep_cols = ch_num * h * w   # x[:, :ch_num] == contiguous prefix of each row

    # Free, layout-preserving reshape to a lane-dense 2D view.
    x2d = x.reshape(b, full_cols)

    itemsize = jnp.dtype(x.dtype).itemsize
    tile_cols = _choose_tile_cols(b, keep_cols, itemsize)
    num_blocks = -(-keep_cols // tile_cols)

    # Ragged last block: output stores past keep_cols are masked by Pallas;
    # any extra input lanes read there are either valid trailing channels
    # (ch_num < c) or edge-padded (ch_num == c) and are discarded anyway.
    out2d = pl.pallas_call(
        _zero_kernel,
        out_shape=jax.ShapeDtypeStruct((b, keep_cols), x.dtype),
        grid=(num_blocks,),
        in_specs=[pl.BlockSpec((b, tile_cols), lambda i: (0, i))],
        out_specs=pl.BlockSpec((b, tile_cols), lambda i: (0, i)),
        compiler_params=pltpu.CompilerParams(
            # Independent blocks: lets v7x shard the grid across its two
            # TensorCores; near-zero effect (harmless) on v5e/v6e.
            dimension_semantics=("parallel",),
        ),
    )(x2d)

    return out2d.reshape(b, ch_num, h, w)


if __name__ == "__main__":
    key = jax.random.PRNGKey(0)
    b, c, h, w = 2, 4, 16, 16
    x = jax.random.normal(key, (b, c, h, w), dtype=jnp.float32)
    # NaN propagation check (torch.mul(0.0): NaN * 0 -> NaN).
    x = x.at[0, 0, 0, 0].set(jnp.nan)

    # Case 1: ch_num < c  -> x[:, :ch_num] * 0
    ch_num = 3
    y = zero_forward(x, ch_num)
    jax.block_until_ready(y)
    assert y.shape == (b, ch_num, h, w) and y.dtype == x.dtype
    assert bool(jnp.isnan(y[0, 0, 0, 0]))
    mask = jnp.ones_like(y, dtype=bool).at[0, 0, 0, 0].set(False)
    assert bool(jnp.all(jnp.where(mask, y == 0.0, True)))

    # Case 2: ch_num == c -> x * 0
    y_full = zero_forward(x, c)
    jax.block_until_ready(y_full)
    assert y_full.shape == (b, c, h, w) and y_full.dtype == x.dtype
    assert bool(jnp.isnan(y_full[0, 0, 0, 0]))

    # Case 3: non-128-multiple spatial size (exercises the masked edge block).
    b2, c2, h2, w2 = 2, 5, 7, 7
    x2 = jax.random.normal(jax.random.PRNGKey(1), (b2, c2, h2, w2), jnp.float32)
    y2 = zero_forward(x2, 3)
    jax.block_until_ready(y2)
    assert y2.shape == (b2, 3, h2, w2)
    assert bool(jnp.all(y2 == 0.0))

    print("KERNEL_OK")
</pallas_src>

<mosaic_0001>
module attributes {stable_mosaic.version = 11 : i64} {
  func.func @_zero_kernel(%arg0: i32, %arg1: memref<2x512xf32, #tpu.memory_space<vmem>>, %arg2: memref<2x512xf32, #tpu.memory_space<vmem>>) attributes {dimension_semantics = [#tpu.dimension_semantics<parallel>], iteration_bounds = array<i64: 2>, scalar_prefetch = 0 : i64, scratch_operands = 0 : i64, tpu.core_type = #tpu.core_type<tc>, window_params = [{transform_indices = @transform_0, window_bounds = array<i64: 2, 512>}, {transform_indices = @transform_1, window_bounds = array<i64: 2, 512>}]} {
    %c0 = arith.constant 0 : index
    %c0_0 = arith.constant 0 : index
    %0 = vector.load %arg1[%c0, %c0_0] : memref<2x512xf32, #tpu.memory_space<vmem>>, vector<2x512xf32>
    %cst = arith.constant 0.000000e+00 : f32
    %1 = vector.broadcast %cst : f32 to vector<2x512xf32>
    %2 = arith.mulf %0, %1 : vector<2x512xf32>
    %c0_1 = arith.constant 0 : index
    %c0_2 = arith.constant 0 : index
    %3 = vector.load %arg2[%c0_1, %c0_2] : memref<2x512xf32, #tpu.memory_space<vmem>>, vector<2x512xf32>
    tpu.vector_store %arg2[%c0_1, %c0_2], %2 {strides = array<i32>} : memref<2x512xf32, #tpu.memory_space<vmem>>, vector<2x512xf32>,
    return
  }
  func.func @transform_0(%arg0: i32) -> (i32, i32) {
    %c0_i32 = arith.constant 0 : i32
    %c0_i32_0 = arith.constant 0 : i32
    return %c0_i32, %arg0 : i32, i32
  }
  func.func @transform_1(%arg0: i32) -> (i32, i32) {
    %c0_i32 = arith.constant 0 : i32
    %c0_i32_0 = arith.constant 0 : i32
    return %c0_i32, %arg0 : i32, i32
  }
}

</mosaic_0001>

<llo_original>
// kernel: tpu_custom_call.1
$region0: #{tpu_custom_call.1}
  #allocation0 [shape = 'u32[]', space=smem, size = 0x4, offset = 0x4, fixed_abs, tag = 'smem constant byte address 0x4 - core index']
  #allocation1 [shape = 'u32[72,128]{1,0:T(1,128)}', space=vmem, size = 0x9000, scoped, tag = 'internal scratch']
  %s0 = inlined_call_operand.hbm [shape: f32[2,1024], index: 0, kind: input, shape index: {}]
  %s1 = inlined_call_operand.hbm [shape: f32[2,768], index: 1, kind: output, shape index: {}]
  %s2 = sld [smem:[#allocation0]]
  $region41: #{tpu_custom_call.1} parent=0
    _
  %s4 = ssub.s32 1, %s2
  %s5 = scalar_select 0, %s4, %s2
  $region1: #{tpu_custom_call.1} parent=0
    #allocation2 [shape = 'u8[8192]{0}', space=vmem, size = 0x2000, scoped, tag = 'input window, operand 0']
    #allocation3 [shape = 's32[2]{0}', space=sflag, size = 0x8, scoped, tag = 'scoped memory for tpu_custom_call.1']
    #allocation4 [shape = 's32[2]{0}', space=sflag, size = 0x8, scoped, tag = 'scoped memory for tpu_custom_call.1']
    #allocation5 [shape = 'u8[8192]{0}', space=vmem, size = 0x2000, scoped, tag = 'output window, operand 0']
    %6 = vsyncpa [#allocation3], 0
    %s7 = scalar_lea.sflag [#allocation3], 1
    %8 = vsyncpa %s7, 0
    %9 = vsyncpa [#allocation4], 0
    %s10 = scalar_lea.sflag [#allocation4], 1
    %11 = vsyncpa %s10, 0
    loop: start=0, step=1, limit=4
    $region2: #{tpu_custom_call.1} parent=1 // loop_pre_header
      _
    $region3: #{tpu_custom_call.1} parent=1 // loop_header
      %s13 = sphi 0, %s17
      %p14 = scmp.ge.s32.totalorder %s13, 4
      %s23 = sphi 0, %s25
      %s26 = sphi 0, %s23
      %s27 = sphi 0, %s26
      %s43 = sphi 0, %s27
      %s49 = sphi 0, %s51
      %s52 = sphi 0, %s49
      %s53 = sphi 0, %s52
      %s69 = sphi 0, %s53
    $region4: #{tpu_custom_call.1} parent=1 // loop_header_branch
      %16 = sbr.rel (%p14) target = $region8
    $region5: #{tpu_custom_call.1} parent=1 // loop_body
      %s18 = ssub.s32 %s13, 1
      %s19 = ssub.s32 %s13, 2
      %s20 = sadd.s32 %s13, 1
      %s21 = ssub.s32 %s13, %s20
      %p22 = scmp.eq.s32.totalorder %s21, 0
      %s24 = sadd.s32 %s23, 1
      %s25 = scalar_select %p22, %s23, %s24
      %p28 = pneg %p22
      %p29 = scmp.eq.s32.totalorder %s13, 1
      %p30 = por %p28, %p29
      %p31 = scmp.ne.s32.totalorder %s23, %s26
      %p32 = scmp.eq.s32.totalorder %s13, 0
      %p33 = por %p31, %p32
      %p34 = scmp.ne.s32.totalorder %s23, %s26
      %p35 = scmp.eq.s32.totalorder %s18, 1
      %p36 = por %p34, %p35
      %p37 = scmp.ne.s32.totalorder %s26, %s27
      %p38 = scmp.eq.s32.totalorder %s18, 0
      %p39 = por %p37, %p38
      %p40 = scmp.ne.s32.totalorder %s26, %s27
      %p41 = scmp.eq.s32.totalorder %s19, 1
      %p42 = por %p40, %p41
      %p44 = scmp.ne.s32.totalorder %s27, %s43
      %p45 = scmp.eq.s32.totalorder %s19, 0
      %p46 = por %p44, %p45
      %s47 = ssub.s32 %s13, %s20
      %p48 = scmp.eq.s32.totalorder %s47, 0
      %s50 = sadd.s32 %s49, 1
      %s51 = scalar_select %p48, %s49, %s50
      %p54 = pneg %p48
      %p55 = scmp.eq.s32.totalorder %s13, 1
      %p56 = por %p54, %p55
      %p57 = scmp.ne.s32.totalorder %s49, %s52
      %p58 = scmp.eq.s32.totalorder %s13, 0
      %p59 = por %p57, %p58
      %p60 = scmp.ne.s32.totalorder %s49, %s52
      %p61 = scmp.eq.s32.totalorder %s18, 1
      %p62 = por %p60, %p61
      %p63 = scmp.ne.s32.totalorder %s52, %s53
      %p64 = scmp.eq.s32.totalorder %s18, 0
      %p65 = por %p63, %p64
      %p66 = scmp.ne.s32.totalorder %s52, %s53
      %p67 = scmp.eq.s32.totalorder %s19, 1
      %p68 = por %p66, %p67
      %p70 = scmp.ne.s32.totalorder %s53, %s69
      %p71 = scmp.eq.s32.totalorder %s19, 0
      %p72 = por %p70, %p71
      %p73 = scmp.le.s32.totalorder 1, %s13
      %p74 = scmp.lt.s32.totalorder %s13, 3
      %p75 = pnand %p73, %p74
      %p76 = pneg %p75
      // Predicated region
      $region9: #{tpu_custom_call.1} parent=5 // pred_check
        _
      $region10: #{tpu_custom_call.1} parent=5 // pred_check_branch
        %78 = sbr.rel (%p75) target = $region12
      $region11: #{tpu_custom_call.1} parent=5 // pred_region
        %s79 = ssub.s32 %s13, 1
      $region12: #{tpu_custom_call.1} parent=5 // pred_fallthru
        _
      %p80 = scmp.lt.s32.totalorder %s13, 2
      // Predicated region
      $region13: #{tpu_custom_call.1} parent=5 // pred_check
        %p81 = pneg %p80
      $region14: #{tpu_custom_call.1} parent=5 // pred_check_branch
        %83 = sbr.rel (%p81) target = $region16
      $region15: #{tpu_custom_call.1} parent=5 // pred_region
        // Predicated region
        $region17: #{tpu_custom_call.1} parent=15 // pred_check
          %p84 = pneg %p33
        $region18: #{tpu_custom_call.1} parent=15 // pred_check_branch
          %86 = sbr.rel (%p84) target = $region20
        $region19: #{tpu_custom_call.1} parent=15 // pred_region
          %s87 = sand.u32 %s23, 1
          %s88 = scalar_lea.sflag [#allocation3], %s87
          %s89 = sand.u32 %s23, 1
          %s90 = smul.addr %s89, 8
          %s91 = scalar_lea.vmem [#allocation2], %s90
          %s92 = smul.u32 4, %s13
          %94 = vsyncadd %s88, 0
          %s95 = smul.addr %s92, 2
          %s96 = scalar_lea.hbm %s0, %s95
          %s98 = sshll.u32 %s96, 4
          %s99 = int_to_ptr.hbm [resolvable:$true] %s98
          %s100 = sshll.u32 %s91, 4
          %s101 = int_to_ptr.vmem [resolvable:$true] %s100
          %103 = dma.hbm_to_vmem [thread:$0]  %s99, 128, %s101, %s88
        $region20: #{tpu_custom_call.1} parent=15 // pred_fallthru
          _
      $region16: #{tpu_custom_call.1} parent=5 // pred_fallthru
        _
      %p104 = scmp.le.s32.totalorder 1, %s13
      %p105 = scmp.lt.s32.totalorder %s13, 3
      %p106 = pnand %p104, %p105
      %p107 = pneg %p106
      // Predicated region
      $region21: #{tpu_custom_call.1} parent=5 // pred_check
        _
      $region22: #{tpu_custom_call.1} parent=5 // pred_check_branch
        %109 = sbr.rel (%p106) target = $region24
      $region23: #{tpu_custom_call.1} parent=5 // pred_region
        %s110 = ssub.s32 %s13, 1
        %s111 = sand.u32 %s26, 1
        %s112 = scalar_lea.sflag [#allocation3], %s111
        %s113 = sand.u32 %s26, 1
        %s114 = smul.addr %s113, 8
        %s115 = scalar_lea.vmem [#allocation2], %s114
        // Predicated region
        $region25: #{tpu_custom_call.1} parent=23 // pred_check
          %p116 = pneg %p39
        $region26: #{tpu_custom_call.1} parent=23 // pred_check_branch
          %118 = sbr.rel (%p116) target = $region28
        $region27: #{tpu_custom_call.1} parent=23 // pred_region
          %120 = dma.done %s112, 128
        $region28: #{tpu_custom_call.1} parent=23 // pred_fallthru
          _
        %s121 = sand.u32 %s26, 1
        %s122 = scalar_lea.sflag [#allocation3], %s121
        %s123 = sand.u32 %s26, 1
        %s124 = smul.addr %s123, 8
        %s125 = scalar_lea.vmem [#allocation2], %s124
        %p126 = pneg %p39
        %p127 = pneg %p36
        %p128 = pneg %p65
        %p129 = pneg %p62
        %s130 = sand.u32 %s52, 1
        %s131 = scalar_lea.sflag [#allocation4], %s130
        %s132 = sand.u32 %s52, 1
        %s133 = smul.addr %s132, 8
        %s134 = scalar_lea.vmem [#allocation5], %s133
        %s135 = smul.u32 4, %s18
        %s136 = smul.u32 4, %s18
        %s137 = ssub.s32 6, %s136
        %p138 = scmp.lt.s32.totalorder %s137, 4
        %s139 = scalar_select %p138, %s137, 4
        %s140 = smul.u32 2, %s139
        %v141 = vld [vmem:[%s115] sm:$0xff]
        %v142 = vmul.f32 %v141, 0.0
        %143 = vst [vmem:[%s134] sm:$0xff] %v142
        %s144 = sand.u32 %s52, 1
        %s145 = scalar_lea.sflag [#allocation4], %s144
        %s146 = sand.u32 %s52, 1
        %s147 = smul.addr %s146, 8
        %s148 = scalar_lea.vmem [#allocation5], %s147
        // Predicated region
        $region29: #{tpu_custom_call.1} parent=23 // pred_check
          %p149 = pneg %p62
        $region30: #{tpu_custom_call.1} parent=23 // pred_check_branch
          %151 = sbr.rel (%p149) target = $region32
        $region31: #{tpu_custom_call.1} parent=23 // pred_region
          %s152 = smul.u32 4, %s18
          %s153 = ssub.s32 6, %s152
          %p154 = scmp.lt.s32.totalorder %s153, 4
          %s155 = scalar_select %p154, %s153, 4
          %s156 = smul.u32 2, %s155
          %s157 = ssub.s32 8, %s156
          %s158 = sshll.u32 %s157, 4
          %159 = vsyncadd %s145, %s158
          %p160 = scmp.ne.s32.totalorder 0, %s156
          %s161 = smul.addr %s152, 2
          %s162 = scalar_lea.hbm %s1, %s161
          %s163 = smul.u32 %s155, 2
          %s164 = sshll.u32 %s163, 4
          %s165 = sshll.u32 %s148, 4
          %s166 = int_to_ptr.vmem [resolvable:$true] %s165
          %s167 = sshll.u32 %s162, 4
          %s168 = int_to_ptr.hbm [resolvable:$true] %s167
          %170 = dma.vmem_to_hbm [thread:$0]  (%p160), %s166, %s164, %s168, %s145
        $region32: #{tpu_custom_call.1} parent=23 // pred_fallthru
          _
      $region24: #{tpu_custom_call.1} parent=5 // pred_fallthru
        _
      %p171 = scmp.le.s32.totalorder 2, %s13
      // Predicated region
      $region33: #{tpu_custom_call.1} parent=5 // pred_check
        %p172 = pneg %p171
      $region34: #{tpu_custom_call.1} parent=5 // pred_check_branch
        %174 = sbr.rel (%p172) target = $region36
      $region35: #{tpu_custom_call.1} parent=5 // pred_region
        %s175 = ssub.s32 %s13, 2
        // Predicated region
        $region37: #{tpu_custom_call.1} parent=35 // pred_check
          %p176 = pneg %p68
        $region38: #{tpu_custom_call.1} parent=35 // pred_check_branch
          %178 = sbr.rel (%p176) target = $region40
        $region39: #{tpu_custom_call.1} parent=35 // pred_region
          %s179 = sand.u32 %s53, 1
          %s180 = scalar_lea.sflag [#allocation4], %s179
          %s181 = sand.u32 %s53, 1
          %s182 = smul.addr %s181, 8
          %s183 = scalar_lea.vmem [#allocation5], %s182
          %185 = dma.done %s180, 128
        $region40: #{tpu_custom_call.1} parent=35 // pred_fallthru
          _
      $region36: #{tpu_custom_call.1} parent=5 // pred_fallthru
        _
    $region6: #{tpu_custom_call.1} parent=1 // loop_footer
      %s17 = sadd.s32 1, %s13
    $region7: #{tpu_custom_call.1} parent=1 // loop_footer_branch
      %12 = sbr.rel target = $region3
    $region8: #{tpu_custom_call.1} parent=1 // loop_exit
      _
    %186 = vsyncpa [#allocation3], 1
    %s187 = scalar_lea.sflag [#allocation3], 1
    %188 = vsyncpa %s187, 1
    %189 = vsyncpa [#allocation4], 1
    %s190 = scalar_lea.sflag [#allocation4], 1
    %191 = vsyncpa %s190, 1

</llo_original>
